<compile_context>
chip_gen: v7x
topology: tpu7x:2x2x1
jax: 0.10.0
libtpu: 0.0.40
codegen_flags: <defaults>
</compile_context>

<pallas_src>
import functools

import jax
import jax.numpy as jnp
from jax.experimental import pallas as pl
from jax.experimental.pallas import tpu as pltpu

LANE = 128  # pad feature dims to a multiple of the vreg lane width


def _round_up(x: int, m: int) -> int:
    return ((x + m - 1) // m) * m


def _sublane(dtype) -> int:
    # Min second-to-last tile dim: 8 for 4-byte, 16 for 2-byte, 32 for 1-byte.
    return max(8, 32 // jnp.dtype(dtype).itemsize)


def _fused_mlp_kernel(x_ref, w0_ref, b0_ref, wr_ref, br_ref, o_ref, *,
                      num_rest: int, p_hidden: int, p_out: int):
    """All layers fused on one batch tile; weights VMEM-resident.

    x_ref : (tm, D)               input tile, true (unpadded) feature width
    w0_ref: (D, P_h)   bf16       layer-0 weight, pre-transposed (in, out)
    b0_ref: (1, P_h)   f32        layer-0 bias
    wr_ref: (R, P_h, P_col) bf16  remaining layers, pre-transposed, zero-padded
    br_ref: (R, 1, P_col)   f32   remaining biases
    o_ref : (tm, P_out)           padded output tile
    """
    cdt = w0_ref.dtype  # compute dtype fed to the MXU (bf16)

    # Layer 0: true K = D (no dead padding work), N = P_h.
    acc = jnp.dot(x_ref[...].astype(cdt), w0_ref[...],
                  preferred_element_type=jnp.float32)
    acc = jnp.maximum(acc + b0_ref[...], 0.0)          # f32 bias + ReLU
    h = acc.astype(cdt)

    # Middle hidden layers (H -> H). Static unroll: L is small and fixed.
    for i in range(num_rest - 1):
        acc = jnp.dot(h, wr_ref[i, :, :p_hidden],
                      preferred_element_type=jnp.float32)
        acc = jnp.maximum(acc + br_ref[i, :, :p_hidden], 0.0)
        h = acc.astype(cdt)

    # Last layer: only compute / store the (padded) class width.
    acc = jnp.dot(h, wr_ref[num_rest - 1, :, :p_out],
                  preferred_element_type=jnp.float32)
    acc = acc + br_ref[num_rest - 1, :, :p_out]
    o_ref[...] = acc.astype(o_ref.dtype)


def init_mlp_params(input_size, hidden_size, num_classes, hidden_count,
                    param_dtype=jnp.bfloat16):
    """Mirror PyTorch MLP defaults: weights = ones_, biases = zeros_.

    Weights are pre-transposed to (in, out), zero-padded to lane-dense widths
    and stacked once at init time (no per-forward transpose/reshape).  Padded
    rows/cols and biases are exactly zero, so padded lanes stay zero through
    every layer and a final slice recovers the true output.
    """
    assert hidden_count >= 1, "this kernel assumes at least one hidden layer"
    widths = [input_size] + [hidden_size] * hidden_count + [num_classes]
    num_layers = len(widths) - 1
    num_rest = num_layers - 1                      # layers after layer 0

    p_hidden = _round_up(hidden_size, LANE)
    p_out = _round_up(num_classes, LANE)
    p_col = max(p_hidden, p_out)                   # column width of the stack

    # Layer 0: (D, P_h); real block (D, H) = ones (transpose of ones is ones).
    w0 = jnp.zeros((input_size, p_hidden), param_dtype)
    w0 = w0.at[:, :hidden_size].set(1.0)
    b0 = jnp.zeros((1, p_hidden), jnp.float32)     # zeros_ init, kept in f32

    # Remaining layers stacked: middle (H->H) and last (H->C).
    wr = jnp.zeros((num_rest, p_hidden, p_col), param_dtype)
    for i in range(num_rest - 1):
        wr = wr.at[i, :hidden_size, :hidden_size].set(1.0)
    wr = wr.at[num_rest - 1, :hidden_size, :num_classes].set(1.0)
    br = jnp.zeros((num_rest, 1, p_col), jnp.float32)

    return {
        "w0": w0, "b0": b0, "w_rest": wr, "b_rest": br,
        "widths": widths, "p_hidden": p_hidden, "p_out": p_out, "p_col": p_col,
    }


def _vmem_limit_bytes(x_tile_bytes, out_tile_bytes, weight_bytes,
                      act_bytes) -> int:
    # weights/biases single-buffered, x/out tiles double-buffered, plus f32
    # intermediates; 2x headroom, clamped so it is legal on every generation.
    need = weight_bytes + 2 * (x_tile_bytes + out_tile_bytes) + act_bytes
    return int(min(max(2 * need, 32 << 20), 64 << 20))


def mlp_forward(x, params, *, block_batch=256):
    """x: (B, input_size) -> (B, num_classes) via one fused Pallas kernel."""
    w0, b0 = params["w0"], params["b0"]
    wr, br = params["w_rest"], params["b_rest"]
    widths = params["widths"]
    p_h, p_out, p_col = params["p_hidden"], params["p_out"], params["p_col"]
    num_rest = wr.shape[0]
    in_size, out_size = widths[0], widths[-1]
    out_dtype = jnp.float32                        # f32 accumulator output

    B, D = x.shape
    assert D == in_size, (D, in_size)

    # Dtype-aware batch rounding (covers f32 x and f32 out; bf16/int8 too).
    sub = max(_sublane(x.dtype), _sublane(out_dtype))
    Bp = _round_up(B, sub)
    tm = min(block_batch, Bp)
    # Ensure >= 2 grid steps when the batch allows, so the "parallel" axis can
    # be sharded across both TensorCores on megacore parts.
    if Bp // tm < 2 and Bp >= 2 * sub:
        tm = _round_up(pl.cdiv(Bp, 2), sub)
    Bp = _round_up(Bp, tm)
    # Only the batch dim is ever padded (rows are independent; sliced off at
    # the end).  Feature/K padding lives entirely in the weight stacks.
    xp = x if Bp == B else jnp.zeros((Bp, D), x.dtype).at[:B].set(x)

    grid = (Bp // tm,)

    isz = lambda a: a.size * jnp.dtype(a.dtype).itemsize
    weight_bytes = isz(w0) + isz(b0) + isz(wr) + isz(br)
    x_tile_bytes = tm * D * jnp.dtype(x.dtype).itemsize
    out_tile_bytes = tm * p_out * jnp.dtype(out_dtype).itemsize
    act_bytes = 4 * tm * max(p_h, p_out) * 4

    flops = 2 * Bp * (D * p_h + (num_rest - 1) * p_h * p_h + p_h * p_out)
    bytes_accessed = isz(xp) + weight_bytes + Bp * p_out * 4

    out_padded = pl.pallas_call(
        functools.partial(_fused_mlp_kernel, num_rest=num_rest,
                          p_hidden=p_h, p_out=p_out),
        out_shape=jax.ShapeDtypeStruct((Bp, p_out), out_dtype),
        grid=grid,
        in_specs=[
            # Batch-tiled activations (true feature width D).
            pl.BlockSpec((tm, D), lambda i: (i, 0)),
            # Grid-invariant, VMEM-resident parameters: single-buffered.
            pl.BlockSpec((D, p_h), lambda i: (0, 0),
                         pipeline_mode=pl.Buffered(1)),
            pl.BlockSpec((1, p_h), lambda i: (0, 0),
                         pipeline_mode=pl.Buffered(1)),
            pl.BlockSpec((num_rest, p_h, p_col), lambda i: (0, 0, 0),
                         pipeline_mode=pl.Buffered(1)),
            pl.BlockSpec((num_rest, 1, p_col), lambda i: (0, 0, 0),
                         pipeline_mode=pl.Buffered(1)),
        ],
        out_specs=pl.BlockSpec((tm, p_out), lambda i: (i, 0)),
        compiler_params=pltpu.CompilerParams(
            dimension_semantics=("parallel",),
            vmem_limit_bytes=_vmem_limit_bytes(
                x_tile_bytes, out_tile_bytes, weight_bytes, act_bytes)),
        cost_estimate=pl.CostEstimate(
            flops=flops, transcendentals=0, bytes_accessed=bytes_accessed),
    )(xp, w0, b0, wr, br)

    return out_padded[:B, :out_size]


def mlp_reference(x, input_size, hidden_size, num_classes, hidden_count,
                  compute_dtype=jnp.bfloat16):
    """Pure-JAX reference mirroring the PyTorch module with the same
    mixed-precision policy as the kernel (bf16 matmul inputs, f32 accum)."""
    widths = [input_size] + [hidden_size] * hidden_count + [num_classes]
    n = len(widths) - 1
    h = x.astype(jnp.float32)
    for i, (fan_in, fan_out) in enumerate(zip(widths, widths[1:])):
        w = jnp.ones((fan_in, fan_out), compute_dtype)   # ones_ init, (in,out)
        b = jnp.zeros((fan_out,), jnp.float32)           # zeros_ init
        acc = jnp.dot(h.astype(compute_dtype), w,
                      preferred_element_type=jnp.float32) + b
        if i < n - 1:
            acc = jnp.maximum(acc, 0.0)
        h = acc
    return h


if __name__ == "__main__":
    # Small shapes consistent with the module: D=32, H=64, C=16, 2 hidden
    # layers, batch of 8.
    batch = 8
    input_size = 32
    hidden_size = 64
    num_classes = 16
    hidden_count = 2

    key = jax.random.PRNGKey(0)
    x = jax.random.normal(key, (batch, input_size), dtype=jnp.float32)

    params = init_mlp_params(input_size, hidden_size, num_classes,
                             hidden_count, param_dtype=jnp.bfloat16)

    out = jax.block_until_ready(mlp_forward(x, params))
    ref = jax.block_until_ready(
        mlp_reference(x, input_size, hidden_size, num_classes, hidden_count,
                      compute_dtype=jnp.bfloat16))

    assert out.shape == (batch, num_classes), out.shape
    assert out.dtype == jnp.float32, out.dtype
    # Same bf16-input / f32-accumulate policy on both sides, so only
    # accumulation-order noise remains.
    assert jnp.allclose(out, ref, rtol=1e-2, atol=1e-2), "mismatch vs reference"
    print("KERNEL_OK")
</pallas_src>

<mosaic_0001>
module attributes {stable_mosaic.version = 11 : i64} {
  func.func @_fused_mlp_kernel(%arg0: i32, %arg1: memref<8x32xf32, #tpu.memory_space<vmem>>, %arg2: memref<32x128xbf16, #tpu.memory_space<vmem>>, %arg3: memref<1x128xf32, #tpu.memory_space<vmem>>, %arg4: memref<2x128x128xbf16, #tpu.memory_space<vmem>>, %arg5: memref<2x1x128xf32, #tpu.memory_space<vmem>>, %arg6: memref<8x128xf32, #tpu.memory_space<vmem>>) attributes {dimension_semantics = [#tpu.dimension_semantics<parallel>], iteration_bounds = array<i64: 1>, scalar_prefetch = 0 : i64, scratch_operands = 0 : i64, tpu.core_type = #tpu.core_type<tc>, window_params = [{transform_indices = @transform_0, window_bounds = array<i64: 8, 32>}, {pipeline_mode = #tpu.pipeline_mode<synchronous>, transform_indices = @transform_1, window_bounds = array<i64: 32, 128>}, {pipeline_mode = #tpu.pipeline_mode<synchronous>, transform_indices = @transform_2, window_bounds = array<i64: 1, 128>}, {pipeline_mode = #tpu.pipeline_mode<synchronous>, transform_indices = @transform_3, window_bounds = array<i64: 2, 128, 128>}, {pipeline_mode = #tpu.pipeline_mode<synchronous>, transform_indices = @transform_4, window_bounds = array<i64: 2, 1, 128>}, {transform_indices = @transform_5, window_bounds = array<i64: 8, 128>}]} {
    %c0 = arith.constant 0 : index
    %c0_0 = arith.constant 0 : index
    %0 = vector.load %arg1[%c0, %c0_0] : memref<8x32xf32, #tpu.memory_space<vmem>>, vector<8x32xf32>
    %1 = arith.truncf %0 : vector<8x32xf32> to vector<8x32xbf16>
    %c0_1 = arith.constant 0 : index
    %c0_2 = arith.constant 0 : index
    %2 = vector.load %arg2[%c0_1, %c0_2] : memref<32x128xbf16, #tpu.memory_space<vmem>>, vector<32x128xbf16>
    %cst = arith.constant dense<0.000000e+00> : vector<8x128xf32>
    %3 = tpu.matmul %1, %2, %cst {dimension_numbers = #tpu.dot_dimension_numbers<[1], [0], [0], [1], [0, 0, 1, 1], [], []>} : vector<8x32xbf16>, vector<32x128xbf16>, vector<8x128xf32> -> vector<8x128xf32>
    %c0_3 = arith.constant 0 : index
    %c0_4 = arith.constant 0 : index
    %4 = vector.load %arg3[%c0_3, %c0_4] : memref<1x128xf32, #tpu.memory_space<vmem>>, vector<1x128xf32>
    %5 = vector.broadcast %4 : vector<1x128xf32> to vector<8x128xf32>
    %6 = arith.addf %3, %5 : vector<8x128xf32>
    %cst_5 = arith.constant 0.000000e+00 : f32
    %7 = vector.broadcast %cst_5 : f32 to vector<8x128xf32>
    %8 = arith.maximumf %6, %7 : vector<8x128xf32>
    %9 = arith.truncf %8 : vector<8x128xf32> to vector<8x128xbf16>
    %c0_6 = arith.constant 0 : index
    %c0_7 = arith.constant 0 : index
    %c0_8 = arith.constant 0 : index
    %10 = vector.load %arg4[%c0_6, %c0_7, %c0_8] : memref<2x128x128xbf16, #tpu.memory_space<vmem>>, vector<1x128x128xbf16>
    %11 = vector.shape_cast %10 : vector<1x128x128xbf16> to vector<128x128xbf16>
    %cst_9 = arith.constant dense<0.000000e+00> : vector<8x128xf32>
    %12 = tpu.matmul %9, %11, %cst_9 {dimension_numbers = #tpu.dot_dimension_numbers<[1], [0], [0], [1], [0, 0, 1, 1], [], []>} : vector<8x128xbf16>, vector<128x128xbf16>, vector<8x128xf32> -> vector<8x128xf32>
    %c0_10 = arith.constant 0 : index
    %c0_11 = arith.constant 0 : index
    %c0_12 = arith.constant 0 : index
    %13 = vector.load %arg5[%c0_10, %c0_11, %c0_12] : memref<2x1x128xf32, #tpu.memory_space<vmem>>, vector<1x1x128xf32>
    %14 = vector.shape_cast %13 : vector<1x1x128xf32> to vector<1x128xf32>
    %15 = vector.broadcast %14 : vector<1x128xf32> to vector<8x128xf32>
    %16 = arith.addf %12, %15 : vector<8x128xf32>
    %cst_13 = arith.constant 0.000000e+00 : f32
    %17 = vector.broadcast %cst_13 : f32 to vector<8x128xf32>
    %18 = arith.maximumf %16, %17 : vector<8x128xf32>
    %19 = arith.truncf %18 : vector<8x128xf32> to vector<8x128xbf16>
    %c1 = arith.constant 1 : index
    %c0_14 = arith.constant 0 : index
    %c0_15 = arith.constant 0 : index
    %20 = vector.load %arg4[%c1, %c0_14, %c0_15] : memref<2x128x128xbf16, #tpu.memory_space<vmem>>, vector<1x128x128xbf16>
    %21 = vector.shape_cast %20 : vector<1x128x128xbf16> to vector<128x128xbf16>
    %cst_16 = arith.constant dense<0.000000e+00> : vector<8x128xf32>
    %22 = tpu.matmul %19, %21, %cst_16 {dimension_numbers = #tpu.dot_dimension_numbers<[1], [0], [0], [1], [0, 0, 1, 1], [], []>} : vector<8x128xbf16>, vector<128x128xbf16>, vector<8x128xf32> -> vector<8x128xf32>
    %c1_17 = arith.constant 1 : index
    %c0_18 = arith.constant 0 : index
    %c0_19 = arith.constant 0 : index
    %23 = vector.load %arg5[%c1_17, %c0_18, %c0_19] : memref<2x1x128xf32, #tpu.memory_space<vmem>>, vector<1x1x128xf32>
    %24 = vector.shape_cast %23 : vector<1x1x128xf32> to vector<1x128xf32>
    %25 = vector.broadcast %24 : vector<1x128xf32> to vector<8x128xf32>
    %26 = arith.addf %22, %25 : vector<8x128xf32>
    %c0_20 = arith.constant 0 : index
    %c0_21 = arith.constant 0 : index
    %27 = vector.load %arg6[%c0_20, %c0_21] : memref<8x128xf32, #tpu.memory_space<vmem>>, vector<8x128xf32>
    tpu.vector_store %arg6[%c0_20, %c0_21], %26 {strides = array<i32>} : memref<8x128xf32, #tpu.memory_space<vmem>>, vector<8x128xf32>,
    return
  }
  func.func @transform_0(%arg0: i32) -> (i32, i32) {
    %c0_i32 = arith.constant 0 : i32
    %c0_i32_0 = arith.constant 0 : i32
    return %arg0, %c0_i32 : i32, i32
  }
  func.func @transform_1(%arg0: i32) -> (i32, i32) {
    %c0_i32 = arith.constant 0 : i32
    %c0_i32_0 = arith.constant 0 : i32
    %c0_i32_1 = arith.constant 0 : i32
    return %c0_i32, %c0_i32_0 : i32, i32
  }
  func.func @transform_2(%arg0: i32) -> (i32, i32) {
    %c0_i32 = arith.constant 0 : i32
    %c0_i32_0 = arith.constant 0 : i32
    %c0_i32_1 = arith.constant 0 : i32
    return %c0_i32, %c0_i32_0 : i32, i32
  }
  func.func @transform_3(%arg0: i32) -> (i32, i32, i32) {
    %c0_i32 = arith.constant 0 : i32
    %c0_i32_0 = arith.constant 0 : i32
    %c0_i32_1 = arith.constant 0 : i32
    %c0_i32_2 = arith.constant 0 : i32
    return %c0_i32, %c0_i32_0, %c0_i32_1 : i32, i32, i32
  }
  func.func @transform_4(%arg0: i32) -> (i32, i32, i32) {
    %c0_i32 = arith.constant 0 : i32
    %c0_i32_0 = arith.constant 0 : i32
    %c0_i32_1 = arith.constant 0 : i32
    %c0_i32_2 = arith.constant 0 : i32
    return %c0_i32, %c0_i32_0, %c0_i32_1 : i32, i32, i32
  }
  func.func @transform_5(%arg0: i32) -> (i32, i32) {
    %c0_i32 = arith.constant 0 : i32
    %c0_i32_0 = arith.constant 0 : i32
    return %arg0, %c0_i32 : i32, i32
  }
}

</mosaic_0001>

<llo_original>
// kernel: tpu_custom_call.1
$region0: #{tpu_custom_call.1}
  #allocation0 [shape = 'u32[]', space=smem, size = 0x4, offset = 0x4, fixed_abs, tag = 'smem constant byte address 0x4 - core index']
  #allocation1 [shape = 'u32[144,128]{1,0:T(1,128)}', space=vmem, size = 0x12000, scoped, tag = 'internal scratch']
  %s0 = inlined_call_operand.hbm [shape: f32[8,32], index: 0, kind: input, shape index: {}]
  %s1 = inlined_call_operand.hbm [shape: bf16[32,128], index: 1, kind: input, shape index: {}]
  %s2 = inlined_call_operand.vmem [shape: f32[1,128], index: 2, kind: input, shape index: {}]
  %s3 = inlined_call_operand.hbm [shape: bf16[2,128,128], index: 3, kind: input, shape index: {}]
  %s4 = inlined_call_operand.vmem [shape: f32[2,1,128], index: 4, kind: input, shape index: {}]
  %s5 = inlined_call_operand.hbm [shape: f32[8,128], index: 5, kind: output, shape index: {}]
  %s6 = sld [smem:[#allocation0]]
  $region42: #{tpu_custom_call.1} parent=0
    _
  %s8 = ssub.s32 1, %s6
  %s9 = scalar_select 0, %s8, %s6
  $region1: #{tpu_custom_call.1} parent=0
    #allocation2 [shape = 'u8[4096]{0}', space=vmem, size = 0x1000, scoped, tag = 'input window, operand 0, single buffered']
    #allocation3 [shape = 's32[1]{0}', space=sflag, size = 0x4, scoped, tag = 'scoped memory for tpu_custom_call.1']
    #allocation4 [shape = 's32[1]{0}', space=sflag, size = 0x4, scoped, tag = 'scoped memory for tpu_custom_call.1']
    #allocation5 [shape = 'u8[8192]{0}', space=vmem, size = 0x2000, scoped, tag = 'input window, operand 1, single buffered']
    #allocation6 [shape = 's32[1]{0}', space=sflag, size = 0x4, scoped, tag = 'scoped memory for tpu_custom_call.1']
    #allocation7 [shape = 'u8[65536]{0}', space=vmem, size = 0x10000, scoped, tag = 'input window, operand 3, single buffered']
    #allocation8 [shape = 'u8[4096]{0}', space=vmem, size = 0x1000, scoped, tag = 'output window, operand 0, single buffered']
    %10 = vsyncpa [#allocation3], 0
    %11 = vsyncpa [#allocation6], 0
    %12 = vsyncpa [#allocation4], 0
    // Predicated region
    $region2: #{tpu_custom_call.1} parent=1 // pred_check
      _
    $region3: #{tpu_custom_call.1} parent=1 // pred_check_branch
      %14 = sbr.rel (0) target = $region5
    $region4: #{tpu_custom_call.1} parent=1 // pred_region
      %s16 = ssub.s32 128, 128
      %17 = vsyncadd [#allocation3], %s16
      %s19 = sshll.u32 [#allocation2], 4
      %s20 = int_to_ptr.vmem [resolvable:$true] %s19
      %22 = dma.hbm_to_vmem [thread:$0]  %s0, 128, %s20, [#allocation3]
    $region5: #{tpu_custom_call.1} parent=1 // pred_fallthru
      _
    // Predicated region
    $region6: #{tpu_custom_call.1} parent=1 // pred_check
      _
    $region7: #{tpu_custom_call.1} parent=1 // pred_check_branch
      %24 = sbr.rel (0) target = $region9
    $region8: #{tpu_custom_call.1} parent=1 // pred_region
      %s26 = ssub.s32 256, 256
      %27 = vsyncadd [#allocation6], %s26
      %s28 = sshll.u32 [#allocation5], 4
      %s29 = int_to_ptr.vmem [resolvable:$true] %s28
      %34 = dma.hbm_to_vmem [thread:$0]  %s1, 256, %s29, [#allocation6], 64, 64, 4
    $region9: #{tpu_custom_call.1} parent=1 // pred_fallthru
      _
    // Predicated region
    $region10: #{tpu_custom_call.1} parent=1 // pred_check
      _
    $region11: #{tpu_custom_call.1} parent=1 // pred_check_branch
      %36 = sbr.rel (0) target = $region13
    $region12: #{tpu_custom_call.1} parent=1 // pred_region
      _
    $region13: #{tpu_custom_call.1} parent=1 // pred_fallthru
      _
    // Predicated region
    $region14: #{tpu_custom_call.1} parent=1 // pred_check
      _
    $region15: #{tpu_custom_call.1} parent=1 // pred_check_branch
      %38 = sbr.rel (0) target = $region17
    $region16: #{tpu_custom_call.1} parent=1 // pred_region
      %s40 = ssub.s32 2048, 2048
      %41 = vsyncadd [#allocation6], %s40
      %s42 = sshll.u32 [#allocation7], 4
      %s43 = int_to_ptr.vmem [resolvable:$true] %s42
      %48 = dma.hbm_to_vmem [thread:$0]  %s3, 2048, %s43, [#allocation6], 64, 64, 4
    $region17: #{tpu_custom_call.1} parent=1 // pred_fallthru
      _
    // Predicated region
    $region18: #{tpu_custom_call.1} parent=1 // pred_check
      _
    $region19: #{tpu_custom_call.1} parent=1 // pred_check_branch
      %50 = sbr.rel (0) target = $region21
    $region20: #{tpu_custom_call.1} parent=1 // pred_region
      _
    $region21: #{tpu_custom_call.1} parent=1 // pred_fallthru
      _
    // Predicated region
    $region22: #{tpu_custom_call.1} parent=1 // pred_check
      _
    $region23: #{tpu_custom_call.1} parent=1 // pred_check_branch
      %52 = sbr.rel (0) target = $region25
    $region24: #{tpu_custom_call.1} parent=1 // pred_region
      %53 = dma.done [#allocation3], 128
    $region25: #{tpu_custom_call.1} parent=1 // pred_fallthru
      _
    // Predicated region
    $region26: #{tpu_custom_call.1} parent=1 // pred_check
      _
    $region27: #{tpu_custom_call.1} parent=1 // pred_check_branch
      %55 = sbr.rel (0) target = $region29
    $region28: #{tpu_custom_call.1} parent=1 // pred_region
      %56 = dma.done [#allocation6], 256
    $region29: #{tpu_custom_call.1} parent=1 // pred_fallthru
      _
    // Predicated region
    $region30: #{tpu_custom_call.1} parent=1 // pred_check
      _
    $region31: #{tpu_custom_call.1} parent=1 // pred_check_branch
      %58 = sbr.rel (0) target = $region33
    $region32: #{tpu_custom_call.1} parent=1 // pred_region
      %59 = dma.done [#allocation6], 2048
    $region33: #{tpu_custom_call.1} parent=1 // pred_fallthru
      _
    %v61 = vld [vmem:[#allocation2] sm:$0xff]
    %v62 = vpack.c.bf16 %v61, %v61
    %v63 = vld [vmem:[#allocation5] sm:$0xf]
    %v64 = vld [vmem:[#allocation5 + $0x4] sm:$0xf]
    %v65 = vld [vmem:[#allocation5 + $0x8] sm:$0xf]
    %v66 = vld [vmem:[#allocation5 + $0xc] sm:$0xf]
    %v67 = vld [vmem:[%s2] sm:$0x1]
    %v69 = vlaneseq
    %v70 = vshrl.u32 %v69, 7
    %v71 = vsub.s32 0, %v70
    %v72 = vrot.slane %v67, %v71
    %v78 = vunpack.c.l.b16 %v63
    %v79 = vunpack.c.l.b16 %v64
    %v80 = vunpack.c.l.b16 %v65
    %v81 = vunpack.c.l.b16 %v66
    %v82 = vpack.c.b16 %v79, %v78
    %v83 = vpack.c.b16 %v81, %v80
    %vm86 = vcmask 261120
    %v88 = vsel %vm86, %v62, 0
    %90 = vmatprep.subr.bf16.mxu0 0
    %91 = vmatpush1.bf16.msra.mxu0 %v82
    %92 = vmatprep.subr.bf16.mxu0 0
    %93 = vmatpush1.bf16.msra.mxu0 %v83
    %94 = vmatprep.subr.bf16.mxu0 0
    %95 = vmatpush1.bf16.msra.mxu0 0
    %96 = vmatprep.subr.bf16.mxu0 0
    %97 = vmatpush1.bf16.msra.mxu0 0
    %98 = vmatprep.subr.bf16.mxu0 0
    %99 = vmatpush1.bf16.msra.mxu0 0
    %100 = vmatprep.subr.bf16.mxu0 0
    %101 = vmatpush1.bf16.msra.mxu0 0
    %102 = vmatprep.subr.bf16.mxu0 0
    %103 = vmatpush1.bf16.msra.mxu0 0
    %104 = vmatprep.subr.bf16.mxu0 0
    %105 = vmatpush1.bf16.msra.mxu0 0
    %106 = vmatprep.subr.bf16.mxu0 0
    %107 = vmatpush1.bf16.msra.mxu0 0
    %108 = vmatprep.subr.bf16.mxu0 0
    %109 = vmatpush1.bf16.msra.mxu0 0
    %110 = vmatprep.subr.bf16.mxu0 0
    %111 = vmatpush1.bf16.msra.mxu0 0
    %112 = vmatprep.subr.bf16.mxu0 0
    %113 = vmatpush1.bf16.msra.mxu0 0
    %114 = vmatprep.subr.bf16.mxu0 0
    %115 = vmatpush1.bf16.msra.mxu0 0
    %116 = vmatprep.subr.bf16.mxu0 0
    %117 = vmatpush1.bf16.msra.mxu0 0
    %118 = vmatprep.subr.bf16.mxu0 0
    %119 = vmatpush1.bf16.msra.mxu0 0
    %120 = vmatprep.subr.bf16.mxu0 0
    %121 = vmatpush1.bf16.msra.mxu0 0
    %122 = vmatprep.mubr.bf16.mxu0 0
    %123 = vmatmul.mubr.bf16.gmra.mrb[0].mxu0 %v88
    %v124 = vpop.f32.mrb[0].mxu0
    %v125 = vadd.f32 %v72, %v124
    %v126 = vpop.f32.mrb[0].mxu0
    %v127 = vpop.f32.mrb[0].mxu0
    %v128 = vpop.f32.mrb[0].mxu0
    %129 = vdwg.mxu0
    %v130 = vmax.f32 %v125, 0.0
    %v131 = vpack.c.bf16 %v130, %v130
    %v132 = vld [vmem:[#allocation7] sm:$0xf]
    %v133 = vld [vmem:[#allocation7 + $0x4] sm:$0xf]
    %v134 = vld [vmem:[#allocation7 + $0x8] sm:$0xf]
    %v135 = vld [vmem:[#allocation7 + $0xc] sm:$0xf]
    %v136 = vld [vmem:[#allocation7 + $0x10] sm:$0xf]
    %v137 = vld [vmem:[#allocation7 + $0x14] sm:$0xf]
    %v138 = vld [vmem:[#allocation7 + $0x18] sm:$0xf]
    %v139 = vld [vmem:[#allocation7 + $0x1c] sm:$0xf]
    %v140 = vld [vmem:[#allocation7 + $0x20] sm:$0xf]
    %v141 = vld [vmem:[#allocation7 + $0x24] sm:$0xf]
    %v142 = vld [vmem:[#allocation7 + $0x28] sm:$0xf]
    %v143 = vld [vmem:[#allocation7 + $0x2c] sm:$0xf]
    %v144 = vld [vmem:[#allocation7 + $0x30] sm:$0xf]
    %v145 = vld [vmem:[#allocation7 + $0x34] sm:$0xf]
    %v146 = vld [vmem:[#allocation7 + $0x38] sm:$0xf]
    %v147 = vld [vmem:[#allocation7 + $0x3c] sm:$0xf]
    %v148 = vld [vmem:[%s4] sm:$0x1]
    %v150 = vlaneseq
    %v151 = vshrl.u32 %v150, 7
    %v152 = vsub.s32 0, %v151
    %v153 = vrot.slane %v148, %v152
    %v171 = vunpack.c.l.b16 %v132
    %v172 = vunpack.c.l.b16 %v133
    %v173 = vunpack.c.l.b16 %v134
    %v174 = vunpack.c.l.b16 %v135
    %v175 = vunpack.c.l.b16 %v136
    %v176 = vunpack.c.l.b16 %v137
    %v177 = vunpack.c.l.b16 %v138
    %v178 = vunpack.c.l.b16 %v139
    %v179 = vunpack.c.l.b16 %v140
    %v180 = vunpack.c.l.b16 %v141
    %v181 = vunpack.c.l.b16 %v142
    %v182 = vunpack.c.l.b16 %v143
    %v183 = vunpack.c.l.b16 %v144
    %v184 = vunpack.c.l.b16 %v145
    %v185 = vunpack.c.l.b16 %v146
    %v186 = vunpack.c.l.b16 %v147
    %v187 = vpack.c.b16 %v172, %v171
    %v188 = vpack.c.b16 %v174, %v173
    %v189 = vpack.c.b16 %v176, %v175
    %v190 = vpack.c.b16 %v178, %v177
    %v191 = vpack.c.b16 %v180, %v179
    %v192 = vpack.c.b16 %v182, %v181
    %v193 = vpack.c.b16 %v184, %v183
    %v194 = vpack.c.b16 %v186, %v185
    %203 = vmatprep.subr.bf16.mxu0 0
    %204 = vmatpush1.bf16.msra.mxu0 %v187
    %205 = vmatprep.subr.bf16.mxu0 0
    %206 = vmatpush1.bf16.msra.mxu0 %v188
    %207 = vmatprep.subr.bf16.mxu0 0
    %208 = vmatpush1.bf16.msra.mxu0 %v189
    %209 = vmatprep.subr.bf16.mxu0 0
    %210 = vmatpush1.bf16.msra.mxu0 %v190
    %211 = vmatprep.subr.bf16.mxu0 0
    %212 = vmatpush1.bf16.msra.mxu0 %v191
    %213 = vmatprep.subr.bf16.mxu0 0
    %214 = vmatpush1.bf16.msra.mxu0 %v192
    %215 = vmatprep.subr.bf16.mxu0 0
    %216 = vmatpush1.bf16.msra.mxu0 %v193
    %217 = vmatprep.subr.bf16.mxu0 0
    %218 = vmatpush1.bf16.msra.mxu0 %v194
    %219 = vmatprep.subr.bf16.mxu0 0
    %220 = vmatpush1.bf16.msra.mxu0 0
    %221 = vmatprep.subr.bf16.mxu0 0
    %222 = vmatpush1.bf16.msra.mxu0 0
    %223 = vmatprep.subr.bf16.mxu0 0
    %224 = vmatpush1.bf16.msra.mxu0 0
    %225 = vmatprep.subr.bf16.mxu0 0
    %226 = vmatpush1.bf16.msra.mxu0 0
    %227 = vmatprep.subr.bf16.mxu0 0
    %228 = vmatpush1.bf16.msra.mxu0 0
    %229 = vmatprep.subr.bf16.mxu0 0
    %230 = vmatpush1.bf16.msra.mxu0 0
    %231 = vmatprep.subr.bf16.mxu0 0
    %232 = vmatpush1.bf16.msra.mxu0 0
    %233 = vmatprep.subr.bf16.mxu0 0
    %234 = vmatpush1.bf16.msra.mxu0 0
    %235 = vmatprep.mubr.bf16.mxu0 0
    %236 = vmatmul.mubr.bf16.gmra.mrb[0].mxu0 %v131
    %v237 = vpop.f32.mrb[0].mxu0
    %v238 = vadd.f32 %v153, %v237
    %v239 = vpop.f32.mrb[0].mxu0
    %v240 = vpop.f32.mrb[0].mxu0
    %v241 = vpop.f32.mrb[0].mxu0
    %242 = vdwg.mxu0
    %v243 = vmax.f32 %v238, 0.0
    %v244 = vpack.c.bf16 %v243, %v243
    %s245 = scalar_lea.vmem [#allocation7], 64
    %v246 = vld [vmem:[%s245] sm:$0xf]
    %v247 = vld [vmem:[%s245 + $0x4] sm:$0xf]
    %v248 = vld [vmem:[%s245 + $0x8] sm:$0xf]
    %v249 = vld [vmem:[%s245 + $0xc] sm:$0xf]
    %v250 = vld [vmem:[%s245 + $0x10] sm:$0xf]
    %v251 = vld [vmem:[%s245 + $0x14] sm:$0xf]
    %v252 = vld [vmem:[%s245 + $0x18] sm:$0xf]
    %v253 = vld [vmem:[%s245 + $0x1c] sm:$0xf]
    %v254 = vld [vmem:[%s245 + $0x20] sm:$0xf]
    %v255 = vld [vmem:[%s245 + $0x24] sm:$0xf]
    %v256 = vld [vmem:[%s245 + $0x28] sm:$0xf]
    %v257 = vld [vmem:[%s245 + $0x2c] sm:$0xf]
    %v258 = vld [vmem:[%s245 + $0x30] sm:$0xf]
    %v259 = vld [vmem:[%s245 + $0x34] sm:$0xf]
    %v260 = vld [vmem:[%s245 + $0x38] sm:$0xf]
    %v261 = vld [vmem:[%s245 + $0x3c] sm:$0xf]
    %s262 = scalar_lea.vmem %s4, 1
    %v263 = vld [vmem:[%s262] sm:$0x1]
    %v265 = vlaneseq
    %v266 = vshrl.u32 %v265, 7
    %v267 = vsub.s32 0, %v266
    %v268 = vrot.slane %v263, %v267
    %v286 = vunpack.c.l.b16 %v246
    %v287 = vunpack.c.l.b16 %v247
    %v288 = vunpack.c.l.b16 %v248
    %v289 = vunpack.c.l.b16 %v249
    %v290 = vunpack.c.l.b16 %v250
    %v291 = vunpack.c.l.b16 %v251
    %v292 = vunpack.c.l.b16 %v252
    %v293 = vunpack.c.l.b16 %v253
    %v294 = vunpack.c.l.b16 %v254
    %v295 = vunpack.c.l.b16 %v255
    %v296 = vunpack.c.l.b16 %v256
    %v297 = vunpack.c.l.b16 %v257
    %v298 = vunpack.c.l.b16 %v258
    %v299 = vunpack.c.l.b16 %v259
    %v300 = vunpack.c.l.b16 %v260
    %v301 = vunpack.c.l.b16 %v261
    %v302 = vpack.c.b16 %v287, %v286
    %v303 = vpack.c.b16 %v289, %v288
    %v304 = vpack.c.b16 %v291, %v290
    %v305 = vpack.c.b16 %v293, %v292
    %v306 = vpack.c.b16 %v295, %v294
    %v307 = vpack.c.b16 %v297, %v296
    %v308 = vpack.c.b16 %v299, %v298
    %v309 = vpack.c.b16 %v301, %v300
    %318 = vmatprep.subr.bf16.mxu0 0
    %319 = vmatpush1.bf16.msra.mxu0 %v302
    %320 = vmatprep.subr.bf16.mxu0 0
    %321 = vmatpush1.bf16.msra.mxu0 %v303
    %322 = vmatprep.subr.bf16.mxu0 0
    %323 = vmatpush1.bf16.msra.mxu0 %v304
    %324 = vmatprep.subr.bf16.mxu0 0
    %325 = vmatpush1.bf16.msra.mxu0 %v305
    %326 = vmatprep.subr.bf16.mxu0 0
    %327 = vmatpush1.bf16.msra.mxu0 %v306
    %328 = vmatprep.subr.bf16.mxu0 0
    %329 = vmatpush1.bf16.msra.mxu0 %v307
    %330 = vmatprep.subr.bf16.mxu0 0
    %331 = vmatpush1.bf16.msra.mxu0 %v308
    %332 = vmatprep.subr.bf16.mxu0 0
    %333 = vmatpush1.bf16.msra.mxu0 %v309
    %334 = vmatprep.subr.bf16.mxu0 0
    %335 = vmatpush1.bf16.msra.mxu0 0
    %336 = vmatprep.subr.bf16.mxu0 0
    %337 = vmatpush1.bf16.msra.mxu0 0
    %338 = vmatprep.subr.bf16.mxu0 0
    %339 = vmatpush1.bf16.msra.mxu0 0
    %340 = vmatprep.subr.bf16.mxu0 0
    %341 = vmatpush1.bf16.msra.mxu0 0
    %342 = vmatprep.subr.bf16.mxu0 0
    %343 = vmatpush1.bf16.msra.mxu0 0
    %344 = vmatprep.subr.bf16.mxu0 0
    %345 = vmatpush1.bf16.msra.mxu0 0
    %346 = vmatprep.subr.bf16.mxu0 0
    %347 = vmatpush1.bf16.msra.mxu0 0
    %348 = vmatprep.subr.bf16.mxu0 0
    %349 = vmatpush1.bf16.msra.mxu0 0
    %350 = vmatprep.mubr.bf16.mxu0 0
    %351 = vmatmul.mubr.bf16.gmra.mrb[0].mxu0 %v244
    %v352 = vpop.f32.mrb[0].mxu0
    %v353 = vadd.f32 %v268, %v352
    %v354 = vpop.f32.mrb[0].mxu0
    %v355 = vpop.f32.mrb[0].mxu0
    %v356 = vpop.f32.mrb[0].mxu0
    %357 = vdwg.mxu0
    %358 = vst [vmem:[#allocation8] sm:$0xff] %v353
    // Predicated region
    $region34: #{tpu_custom_call.1} parent=1 // pred_check
      _
    $region35: #{tpu_custom_call.1} parent=1 // pred_check_branch
      %360 = sbr.rel (0) target = $region37
    $region36: #{tpu_custom_call.1} parent=1 // pred_region
      %s362 = ssub.s32 128, 128
      %363 = vsyncadd [#allocation4], %s362
      %s365 = sshll.u32 [#allocation8], 4
      %s366 = int_to_ptr.vmem [resolvable:$true] %s365
      %368 = dma.vmem_to_hbm [thread:$0]  %s366, 128, %s5, [#allocation4]
    $region37: #{tpu_custom_call.1} parent=1 // pred_fallthru
      _
    // Predicated region
    $region38: #{tpu_custom_call.1} parent=1 // pred_check
      _
    $region39: #{tpu_custom_call.1} parent=1 // pred_check_branch
      %370 = sbr.rel (0) target = $region41
    $region40: #{tpu_custom_call.1} parent=1 // pred_region
      %371 = dma.done [#allocation4], 128
    $region41: #{tpu_custom_call.1} parent=1 // pred_fallthru
      _
    %372 = vsyncpa [#allocation3], 1
    %373 = vsyncpa [#allocation6], 1
    %374 = vsyncpa [#allocation4], 1

</llo_original>
